<compile_context>
chip_gen: v7x
topology: tpu7x:2x2x1
jax: 0.10.0
libtpu: 0.0.40
codegen_flags: <defaults>
</compile_context>

<pallas_src>
import jax
import jax.numpy as jnp
from jax.experimental import pallas as pl
from jax.experimental.pallas import tpu as pltpu

NUM_TRANSFORMS = 3


def fused_affine_kernel(x_ref, scale_ref, shift_ref, y_ref):
    """y = x * scale + shift.  scale/shift are (1, TD) f32, broadcast over rows."""
    x = x_ref[...].astype(jnp.float32)
    y_ref[...] = (x * scale_ref[...] + shift_ref[...]).astype(y_ref.dtype)


def _round_down(n, m):
    return (n // m) * m


def sequential_transform_forward(
    x, log_scales, shifts, *,
    target_tile_bytes=2 * 1024 * 1024,    # per x tile; ~8 MiB total w/ dbl-buffered x+y
    max_feature_tile_bytes=1024 * 1024,   # per-row cap before feature-axis tiling kicks in
):
    """Forward pass of SequentialTransform with T elementwise affine flows.

    Returns (y, logL) with y.shape == x.shape and logL.shape == (batch,).
    """
    B, D = x.shape
    T = log_scales.shape[0]
    dtype = x.dtype
    itemsize = jnp.dtype(dtype).itemsize

    # ---- Fold the T affines into a single affine (tiny T x D precompute, f32).
    ls = log_scales.astype(jnp.float32)
    sh = shifts.astype(jnp.float32)
    comb_scale = jnp.ones((D,), jnp.float32)
    comb_shift = jnp.zeros((D,), jnp.float32)
    for t in range(T):                     # T is small & static
        s_t = jnp.exp(ls[t])
        comb_scale = comb_scale * s_t
        comb_shift = comb_shift * s_t + sh[t]

    # logL is independent of x: constant broadcast, computed outside the kernel.
    logL = jnp.broadcast_to(jnp.sum(ls), (B,)).astype(jnp.float32)

    scale_2d = comb_scale.reshape(1, D)    # kept in f32 inside the kernel
    shift_2d = comb_shift.reshape(1, D)

    # ---- Feature tiling: only when D is a multiple of 128 AND a full row tile
    #      would be too large; otherwise a full-extent last-dim block (legal for
    #      any D, no padding, no dead lanes).
    row_bytes = D * itemsize
    if D % 128 == 0 and row_bytes > max_feature_tile_bytes:
        TD = max(128, _round_down(max_feature_tile_bytes // itemsize, 128))
        TD = min(TD, D)
    else:
        TD = D
    # TODO(synk): a huge D that is not a multiple of 128 cannot be feature-tiled
    # without padding; such shapes fall back to a single (8, D) minimum tile.

    # ---- Batch tiling sized by bytes, rounded to native sublane packing.
    sub = max(8, 32 // itemsize)           # 8 f32 / 16 bf16 / 32 int8,fp8
    tile_row_bytes = TD * itemsize
    TB = max(sub, min(_round_down(target_tile_bytes // tile_row_bytes, sub), 8192))
    if TB >= B:
        TB = B                             # full-extent batch block (legal for any B)

    # No wrapper-side padding: Pallas masks ragged edge blocks, which is safe
    # for a purely elementwise output.
    grid = (pl.cdiv(B, TB), pl.cdiv(D, TD))

    y = pl.pallas_call(
        fused_affine_kernel,
        out_shape=jax.ShapeDtypeStruct((B, D), dtype),
        grid_spec=pltpu.PrefetchScalarGridSpec(
            num_scalar_prefetch=0,
            grid=grid,
            in_specs=[
                pl.BlockSpec((TB, TD), lambda i, j: (i, j)),   # streamed x tiles
                pl.BlockSpec((1, TD), lambda i, j: (0, j)),    # combined scale (f32)
                pl.BlockSpec((1, TD), lambda i, j: (0, j)),    # combined shift (f32)
            ],
            out_specs=pl.BlockSpec((TB, TD), lambda i, j: (i, j)),
        ),
        compiler_params=pltpu.CompilerParams(
            dimension_semantics=("parallel", "parallel"),      # shard across TCs (v7x)
        ),
    )(x, scale_2d, shift_2d)

    return y, logL


def reference_forward(x, log_scales, shifts):
    """Pure-JAX reference mirroring SequentialTransform.forward semantics."""
    x = x.astype(jnp.float32)
    ls = log_scales.astype(jnp.float32)
    sh = shifts.astype(jnp.float32)
    logL = jnp.zeros((x.shape[0],), jnp.float32)
    for t in range(ls.shape[0]):
        x = x * jnp.exp(ls[t])[None, :] + sh[t][None, :]
        logL = logL + jnp.broadcast_to(jnp.sum(ls[t]), (x.shape[0],))
    return x, logL


def _check(B, D, key, dtype=jnp.float32, **kw):
    k_x, k_ls, k_sh = jax.random.split(key, 3)
    x = jax.random.normal(k_x, (B, D), dtype=jnp.float32).astype(dtype)
    log_scales = 0.1 * jax.random.normal(k_ls, (NUM_TRANSFORMS, D), dtype=jnp.float32)
    shifts = 0.05 * jax.random.normal(k_sh, (NUM_TRANSFORMS, D), dtype=jnp.float32)

    y, logL = sequential_transform_forward(x, log_scales, shifts, **kw)
    jax.block_until_ready((y, logL))

    y_ref, logL_ref = reference_forward(x, log_scales, shifts)
    assert y.shape == x.shape and y.dtype == dtype and logL.shape == (B,)
    tol = 2e-2 if dtype == jnp.bfloat16 else 1e-5
    assert jnp.allclose(y.astype(jnp.float32), y_ref, atol=tol, rtol=tol)
    assert jnp.allclose(logL, logL_ref, atol=1e-5, rtol=1e-5)


if __name__ == "__main__":
    key = jax.random.PRNGKey(0)
    k0, k1, k2, k3 = jax.random.split(key, 4)

    # Small ragged-D case: full-extent blocks on both axes, single grid step.
    _check(B=36, D=32, key=k0)
    # Ragged batch tiling without padding: TB=128 rows -> grid (3,1), masked last block.
    _check(B=300, D=256, key=k1, target_tile_bytes=128 * 1024)
    # bf16 I/O path: sublane-16 rounded row tiles, f32 math inside, 2 grid steps.
    _check(B=64, D=128, key=k2, dtype=jnp.bfloat16, target_tile_bytes=8 * 1024)
    # Feature-axis tiling path: TD=128 -> grid (1,2) over the feature dim.
    _check(B=40, D=256, key=k3, target_tile_bytes=64 * 1024, max_feature_tile_bytes=512)

    print("KERNEL_OK")
</pallas_src>

<mosaic_0001>
module attributes {stable_mosaic.version = 11 : i64} {
  func.func @fused_affine_kernel(%arg0: i32, %arg1: i32, %arg2: memref<36x32xf32, #tpu.memory_space<vmem>>, %arg3: memref<1x32xf32, #tpu.memory_space<vmem>>, %arg4: memref<1x32xf32, #tpu.memory_space<vmem>>, %arg5: memref<36x32xf32, #tpu.memory_space<vmem>>) attributes {dimension_semantics = [#tpu.dimension_semantics<parallel>, #tpu.dimension_semantics<parallel>], iteration_bounds = array<i64: 1, 1>, scalar_prefetch = 0 : i64, scratch_operands = 0 : i64, tpu.core_type = #tpu.core_type<tc>, window_params = [{transform_indices = @transform_0, window_bounds = array<i64: 36, 32>}, {transform_indices = @transform_1, window_bounds = array<i64: 1, 32>}, {transform_indices = @transform_2, window_bounds = array<i64: 1, 32>}, {transform_indices = @transform_3, window_bounds = array<i64: 36, 32>}]} {
    %c0 = arith.constant 0 : index
    %c0_0 = arith.constant 0 : index
    %0 = vector.load %arg2[%c0, %c0_0] : memref<36x32xf32, #tpu.memory_space<vmem>>, vector<36x32xf32>
    %c0_1 = arith.constant 0 : index
    %c0_2 = arith.constant 0 : index
    %1 = vector.load %arg3[%c0_1, %c0_2] : memref<1x32xf32, #tpu.memory_space<vmem>>, vector<1x32xf32>
    %2 = vector.broadcast %1 : vector<1x32xf32> to vector<36x32xf32>
    %3 = arith.mulf %0, %2 : vector<36x32xf32>
    %c0_3 = arith.constant 0 : index
    %c0_4 = arith.constant 0 : index
    %4 = vector.load %arg4[%c0_3, %c0_4] : memref<1x32xf32, #tpu.memory_space<vmem>>, vector<1x32xf32>
    %5 = vector.broadcast %4 : vector<1x32xf32> to vector<36x32xf32>
    %6 = arith.addf %3, %5 : vector<36x32xf32>
    %c0_5 = arith.constant 0 : index
    %c0_6 = arith.constant 0 : index
    %7 = vector.load %arg5[%c0_5, %c0_6] : memref<36x32xf32, #tpu.memory_space<vmem>>, vector<36x32xf32>
    tpu.vector_store %arg5[%c0_5, %c0_6], %6 {strides = array<i32>} : memref<36x32xf32, #tpu.memory_space<vmem>>, vector<36x32xf32>,
    return
  }
  func.func @transform_0(%arg0: i32, %arg1: i32) -> (i32, i32) {
    %c0_i32 = arith.constant 0 : i32
    return %arg0, %arg1 : i32, i32
  }
  func.func @transform_1(%arg0: i32, %arg1: i32) -> (i32, i32) {
    %c0_i32 = arith.constant 0 : i32
    %c0_i32_0 = arith.constant 0 : i32
    return %c0_i32, %arg1 : i32, i32
  }
  func.func @transform_2(%arg0: i32, %arg1: i32) -> (i32, i32) {
    %c0_i32 = arith.constant 0 : i32
    %c0_i32_0 = arith.constant 0 : i32
    return %c0_i32, %arg1 : i32, i32
  }
  func.func @transform_3(%arg0: i32, %arg1: i32) -> (i32, i32) {
    %c0_i32 = arith.constant 0 : i32
    return %arg0, %arg1 : i32, i32
  }
}

</mosaic_0001>

<llo_original>
// kernel: tpu_custom_call.1
$region0: #{tpu_custom_call.1}
  #allocation0 [shape = 'u32[]', space=smem, size = 0x4, offset = 0x4, fixed_abs, tag = 'smem constant byte address 0x4 - core index']
  #allocation1 [shape = 'u32[144,128]{1,0:T(1,128)}', space=vmem, size = 0x12000, scoped, tag = 'internal scratch']
  %s0 = inlined_call_operand.vmem [shape: f32[36,32], index: 0, kind: input, shape index: {}]
  %s1 = inlined_call_operand.vmem [shape: f32[1,32], index: 1, kind: input, shape index: {}]
  %s2 = inlined_call_operand.vmem [shape: f32[1,32], index: 2, kind: input, shape index: {}]
  %s3 = inlined_call_operand.vmem [shape: f32[36,32], index: 3, kind: output, shape index: {}]
  %s4 = sld [smem:[#allocation0]]
  $region22: #{tpu_custom_call.1} parent=0
    _
  %s6 = ssub.s32 1, %s4
  %s7 = scalar_select 0, %s6, %s4
  // Predicated region
  $region2: #{tpu_custom_call.1} parent=0 // pred_check
    _
  $region3: #{tpu_custom_call.1} parent=0 // pred_check_branch
    %9 = sbr.rel (0) target = $region5
  $region4: #{tpu_custom_call.1} parent=0 // pred_region
    _
  $region5: #{tpu_custom_call.1} parent=0 // pred_fallthru
    _
  // Predicated region
  $region6: #{tpu_custom_call.1} parent=0 // pred_check
    _
  $region7: #{tpu_custom_call.1} parent=0 // pred_check_branch
    %11 = sbr.rel (0) target = $region9
  $region8: #{tpu_custom_call.1} parent=0 // pred_region
    _
  $region9: #{tpu_custom_call.1} parent=0 // pred_fallthru
    _
  // Predicated region
  $region10: #{tpu_custom_call.1} parent=0 // pred_check
    _
  $region11: #{tpu_custom_call.1} parent=0 // pred_check_branch
    %13 = sbr.rel (0) target = $region13
  $region12: #{tpu_custom_call.1} parent=0 // pred_region
    _
  $region13: #{tpu_custom_call.1} parent=0 // pred_fallthru
    _
  %v14 = vld [vmem:[%s0] sm:$0xff]
  %v15 = vld [vmem:[%s0 + $0x8] sm:$0xff]
  %v16 = vld [vmem:[%s0 + $0x10] sm:$0xff]
  %v17 = vld [vmem:[%s0 + $0x18] sm:$0xff]
  %v18 = vld [vmem:[%s0 + $0x20] sm:$0xf]
  %v19 = vld [vmem:[%s1] sm:$0x1]
  %v21 = vlaneseq
  %v22 = vshrl.u32 %v21, 7
  %v23 = vsub.s32 0, %v22
  %v24 = vrot.slane %v19, %v23
  %v26 = vmul.f32 %v14, %v24
  %v27 = vmul.f32 %v15, %v24
  %v28 = vmul.f32 %v16, %v24
  %v29 = vmul.f32 %v17, %v24
  %v30 = vmul.f32 %v18, %v24
  %v31 = vld [vmem:[%s2] sm:$0x1]
  %v33 = vlaneseq
  %v34 = vshrl.u32 %v33, 7
  %v35 = vsub.s32 0, %v34
  %v36 = vrot.slane %v31, %v35
  %v38 = vadd.f32 %v26, %v36
  %v39 = vadd.f32 %v27, %v36
  %v40 = vadd.f32 %v28, %v36
  %v41 = vadd.f32 %v29, %v36
  %v42 = vadd.f32 %v30, %v36
  %vm43 = vcmask 261120
  %44 = vst.msk [vmem:[%s3] sm:$0xff] %vm43, %v38
  %45 = vst.msk [vmem:[%s3 + $0x8] sm:$0xff] %vm43, %v39
  %46 = vst.msk [vmem:[%s3 + $0x10] sm:$0xff] %vm43, %v40
  %47 = vst.msk [vmem:[%s3 + $0x18] sm:$0xff] %vm43, %v41
  %vm48 = vcmask 257024
  %49 = vst.msk [vmem:[%s3 + $0x20] sm:$0xf] %vm48, %v42
  // Predicated region
  $region14: #{tpu_custom_call.1} parent=0 // pred_check
    _
  $region15: #{tpu_custom_call.1} parent=0 // pred_check_branch
    %51 = sbr.rel (0) target = $region17
  $region16: #{tpu_custom_call.1} parent=0 // pred_region
    _
  $region17: #{tpu_custom_call.1} parent=0 // pred_fallthru
    _
  // Predicated region
  $region18: #{tpu_custom_call.1} parent=0 // pred_check
    _
  $region19: #{tpu_custom_call.1} parent=0 // pred_check_branch
    %53 = sbr.rel (0) target = $region21
  $region20: #{tpu_custom_call.1} parent=0 // pred_region
    _
  $region21: #{tpu_custom_call.1} parent=0 // pred_fallthru
    _

</llo_original>
